<compile_context>
chip_gen: v5e
topology: v5e:2x2
jax: 0.10.0
libtpu: 0.0.40
codegen_flags: <defaults>
</compile_context>

<pallas_src>
import numpy as np
import jax
import jax.numpy as jnp
from jax.experimental import pallas as pl
from jax.experimental.pallas import tpu as pltpu

N_EMBED = 32          # config.n_embed
BLOCK_SIZE = 8        # example sequence length


def feed_forward_kernel(x_ref, fc_w_ref, fc_b_ref, cp_w_ref, cp_b_ref, out_ref):
    x = x_ref[...]                                                     # (Bm, Cp)
    h = jnp.dot(x, fc_w_ref[...],
                preferred_element_type=jnp.float32) + fc_b_ref[...]   # (Bm, Hp)
    h = h * jax.nn.sigmoid(h)                                          # SiLU (EUP + VPU)
    y = jnp.dot(h, cp_w_ref[...],
                preferred_element_type=jnp.float32) + cp_b_ref[...]   # (Bm, Cp)
    # TODO(synk): nn.Dropout is identity here (eval semantics); training-mode dropout
    # would use pltpu.prng_seed + pltpu.stateful_bernoulli.
    out_ref[...] = y.astype(out_ref.dtype)


def _lane_pack_factor(C, M):
    # Pack `pack` consecutive token rows into one 128-lane row when C < 128 so that
    # activation loads/stores are lane-dense (unmasked vst) instead of C-lane masked.
    if C >= 128 or 128 % C != 0:
        return 1
    pack = 128 // C
    return pack if M % pack == 0 else 1


def feed_forward(x, params):
    fc_w, fc_b, cp_w, cp_b = params
    B, T, C = x.shape
    H = fc_w.shape[1]
    M = B * T

    pack = _lane_pack_factor(C, M)
    if pack > 1:
        # Block-diagonal weights keep the packed computation as two plain matmuls:
        # [r0|r1|r2|r3] @ blockdiag(W) = [r0@W | r1@W | r2@W | r3@W].
        # In a real model these packed weights would be precomputed once, not per call.
        eye = jnp.eye(pack, dtype=fc_w.dtype)
        fc_w = jnp.kron(eye, fc_w)                  # (pack*C, pack*H)
        cp_w = jnp.kron(eye, cp_w)                  # (pack*H, pack*C)
        fc_b = jnp.tile(fc_b, (1, pack))            # (1, pack*H)
        cp_b = jnp.tile(cp_b, (1, pack))            # (1, pack*C)
    Cp, Hp = C * pack, H * pack
    Mp = M // pack
    x2 = x.reshape(Mp, Cp)                          # pure metadata reshape (contiguous)

    # Row tiling: one grid step when everything fits comfortably (per-step overhead
    # ~0.35us dominates at small M); otherwise 512-row blocks.  pl.cdiv + Pallas
    # boundary masking handles a ragged last block (no pad / slice HBM round trips).
    if Mp <= 512:
        bm, grid = Mp, 1
    else:
        bm, grid = 512, pl.cdiv(Mp, 512)

    def const_spec(shape):
        # Constant index_map -> block stays resident in VMEM across grid steps.
        # TODO(synk): for scaled-up C (>= ~1024 f32 on v7x's 64 MiB VMEM) tile over the
        # hidden dim with a pl.when-initialized accumulator (or cast weights to bf16)
        # instead of full residence, and single-buffer these specs (pl.Buffered(1)).
        return pl.BlockSpec(shape, lambda i, _n=len(shape): (0,) * _n)

    out2 = pl.pallas_call(
        feed_forward_kernel,
        out_shape=jax.ShapeDtypeStruct((Mp, Cp), x.dtype),
        grid_spec=pltpu.PrefetchScalarGridSpec(
            num_scalar_prefetch=0,
            grid=(grid,),
            in_specs=[
                pl.BlockSpec((bm, Cp), lambda i: (i, 0)),   # packed activation rows
                const_spec((Cp, Hp)),                       # c_fc weight (block-diag)
                const_spec((1, Hp)),                        # c_fc bias
                const_spec((Hp, Cp)),                       # c_proj weight (block-diag)
                const_spec((1, Cp)),                        # c_proj bias
            ],
            out_specs=pl.BlockSpec((bm, Cp), lambda i: (i, 0)),
        ),
        compiler_params=pltpu.CompilerParams(
            dimension_semantics=("parallel",) if grid > 1 else ("arbitrary",)),
    )(x2, fc_w, fc_b, cp_w, cp_b)

    return out2.reshape(B, T, C)


# ---- pure-JAX reference (correctness check only) ----
def reference(x, params):
    fc_w, fc_b, cp_w, cp_b = params
    h = x @ fc_w + fc_b
    h = h * jax.nn.sigmoid(h)        # SiLU
    return h @ cp_w + cp_b           # dropout is identity in eval mode


if __name__ == "__main__":
    key = jax.random.PRNGKey(0)
    ks = jax.random.split(key, 5)
    B, T, C = 2, BLOCK_SIZE, N_EMBED
    Hd = 4 * C

    x = jax.random.normal(ks[0], (B, T, C), jnp.float32)

    def w(k, shape):
        return 0.02 * jax.random.normal(k, shape, jnp.float32)

    # Linear weights stored as (in, out) so the kernel computes x @ W + b,
    # equivalent to PyTorch's x @ weight.T + bias.
    params = (
        w(ks[1], (C, Hd)),                 # c_fc weight
        w(ks[2], (1, Hd)),                 # c_fc bias
        w(ks[3], (Hd, C)),                 # c_proj weight
        w(ks[4], (1, C)),                  # c_proj bias
    )

    out = feed_forward(x, params)
    jax.block_until_ready(out)

    ref = reference(x, params)
    np.testing.assert_allclose(np.asarray(out), np.asarray(ref),
                               rtol=1e-5, atol=1e-6)
    print("KERNEL_OK")
</pallas_src>

<mosaic_0001>
module attributes {stable_mosaic.version = 11 : i64} {
  func.func @feed_forward_kernel(%arg0: i32, %arg1: memref<4x128xf32, #tpu.memory_space<vmem>>, %arg2: memref<128x512xf32, #tpu.memory_space<vmem>>, %arg3: memref<1x512xf32, #tpu.memory_space<vmem>>, %arg4: memref<512x128xf32, #tpu.memory_space<vmem>>, %arg5: memref<1x128xf32, #tpu.memory_space<vmem>>, %arg6: memref<4x128xf32, #tpu.memory_space<vmem>>) attributes {dimension_semantics = [#tpu.dimension_semantics<arbitrary>], iteration_bounds = array<i64: 1>, scalar_prefetch = 0 : i64, scratch_operands = 0 : i64, tpu.core_type = #tpu.core_type<tc>, window_params = [{transform_indices = @transform_0, window_bounds = array<i64: 4, 128>}, {pipeline_mode = #tpu.pipeline_mode<synchronous>, transform_indices = @transform_1, window_bounds = array<i64: 128, 512>}, {pipeline_mode = #tpu.pipeline_mode<synchronous>, transform_indices = @transform_2, window_bounds = array<i64: 1, 512>}, {pipeline_mode = #tpu.pipeline_mode<synchronous>, transform_indices = @transform_3, window_bounds = array<i64: 512, 128>}, {pipeline_mode = #tpu.pipeline_mode<synchronous>, transform_indices = @transform_4, window_bounds = array<i64: 1, 128>}, {transform_indices = @transform_5, window_bounds = array<i64: 4, 128>}]} {
    %c0 = arith.constant 0 : index
    %c0_0 = arith.constant 0 : index
    %0 = vector.load %arg1[%c0, %c0_0] : memref<4x128xf32, #tpu.memory_space<vmem>>, vector<4x128xf32>
    %c0_1 = arith.constant 0 : index
    %c0_2 = arith.constant 0 : index
    %1 = vector.load %arg2[%c0_1, %c0_2] : memref<128x512xf32, #tpu.memory_space<vmem>>, vector<128x512xf32>
    %cst = arith.constant dense<0.000000e+00> : vector<4x512xf32>
    %2 = tpu.matmul %0, %1, %cst {dimension_numbers = #tpu.dot_dimension_numbers<[1], [0], [0], [1], [0, 0, 1, 1], [], []>} : vector<4x128xf32>, vector<128x512xf32>, vector<4x512xf32> -> vector<4x512xf32>
    %c0_3 = arith.constant 0 : index
    %c0_4 = arith.constant 0 : index
    %3 = vector.load %arg3[%c0_3, %c0_4] : memref<1x512xf32, #tpu.memory_space<vmem>>, vector<1x512xf32>
    %4 = vector.broadcast %3 : vector<1x512xf32> to vector<4x512xf32>
    %5 = arith.addf %2, %4 : vector<4x512xf32>
    %6 = arith.negf %5 : vector<4x512xf32>
    %7 = math.exp %6 : vector<4x512xf32>
    %cst_5 = arith.constant 1.000000e+00 : f32
    %8 = vector.broadcast %cst_5 : f32 to vector<4x512xf32>
    %9 = arith.addf %8, %7 : vector<4x512xf32>
    %10 = arith.divf %8, %9 : vector<4x512xf32>
    %11 = arith.mulf %5, %10 : vector<4x512xf32>
    %c0_6 = arith.constant 0 : index
    %c0_7 = arith.constant 0 : index
    %12 = vector.load %arg4[%c0_6, %c0_7] : memref<512x128xf32, #tpu.memory_space<vmem>>, vector<512x128xf32>
    %cst_8 = arith.constant dense<0.000000e+00> : vector<4x128xf32>
    %13 = tpu.matmul %11, %12, %cst_8 {dimension_numbers = #tpu.dot_dimension_numbers<[1], [0], [0], [1], [0, 0, 1, 1], [], []>} : vector<4x512xf32>, vector<512x128xf32>, vector<4x128xf32> -> vector<4x128xf32>
    %c0_9 = arith.constant 0 : index
    %c0_10 = arith.constant 0 : index
    %14 = vector.load %arg5[%c0_9, %c0_10] : memref<1x128xf32, #tpu.memory_space<vmem>>, vector<1x128xf32>
    %15 = vector.broadcast %14 : vector<1x128xf32> to vector<4x128xf32>
    %16 = arith.addf %13, %15 : vector<4x128xf32>
    %c0_11 = arith.constant 0 : index
    %c0_12 = arith.constant 0 : index
    %17 = vector.load %arg6[%c0_11, %c0_12] : memref<4x128xf32, #tpu.memory_space<vmem>>, vector<4x128xf32>
    tpu.vector_store %arg6[%c0_11, %c0_12], %16 {strides = array<i32>} : memref<4x128xf32, #tpu.memory_space<vmem>>, vector<4x128xf32>,
    return
  }
  func.func @transform_0(%arg0: i32) -> (i32, i32) {
    %c0_i32 = arith.constant 0 : i32
    %c0_i32_0 = arith.constant 0 : i32
    return %arg0, %c0_i32 : i32, i32
  }
  func.func @transform_1(%arg0: i32) -> (i32, i32) {
    %c0_i32 = arith.constant 0 : i32
    %c0_i32_0 = arith.constant 0 : i32
    %c0_i32_1 = arith.constant 0 : i32
    return %c0_i32, %c0_i32_0 : i32, i32
  }
  func.func @transform_2(%arg0: i32) -> (i32, i32) {
    %c0_i32 = arith.constant 0 : i32
    %c0_i32_0 = arith.constant 0 : i32
    %c0_i32_1 = arith.constant 0 : i32
    return %c0_i32, %c0_i32_0 : i32, i32
  }
  func.func @transform_3(%arg0: i32) -> (i32, i32) {
    %c0_i32 = arith.constant 0 : i32
    %c0_i32_0 = arith.constant 0 : i32
    %c0_i32_1 = arith.constant 0 : i32
    return %c0_i32, %c0_i32_0 : i32, i32
  }
  func.func @transform_4(%arg0: i32) -> (i32, i32) {
    %c0_i32 = arith.constant 0 : i32
    %c0_i32_0 = arith.constant 0 : i32
    %c0_i32_1 = arith.constant 0 : i32
    return %c0_i32, %c0_i32_0 : i32, i32
  }
  func.func @transform_5(%arg0: i32) -> (i32, i32) {
    %c0_i32 = arith.constant 0 : i32
    %c0_i32_0 = arith.constant 0 : i32
    return %arg0, %c0_i32 : i32, i32
  }
}

</mosaic_0001>

<llo_original>
// kernel: tpu_custom_call.1
$region0: #{tpu_custom_call.1}
  #allocation0 [shape = 'u32[]', space=smem, size = 0x4, offset = 0x4, fixed_abs, tag = 'smem constant byte address 0x4 - core index']
  #allocation1 [shape = 'u32[72,128]{1,0:T(1,128)}', space=vmem, size = 0x9000, scoped, tag = 'internal scratch']
  %s0 = inlined_call_operand.hbm [shape: f32[4,128], index: 0, kind: input, shape index: {}]
  %s1 = inlined_call_operand.hbm [shape: f32[128,512], index: 1, kind: input, shape index: {}]
  %s2 = inlined_call_operand.hbm [shape: f32[1,512], index: 2, kind: input, shape index: {}]
  %s3 = inlined_call_operand.hbm [shape: f32[512,128], index: 3, kind: input, shape index: {}]
  %s4 = inlined_call_operand.vmem [shape: f32[1,128], index: 4, kind: input, shape index: {}]
  %s5 = inlined_call_operand.hbm [shape: f32[4,128], index: 5, kind: output, shape index: {}]
  %s6 = sld [smem:[#allocation0]]
  $region46: #{tpu_custom_call.1} parent=0
    _
  %s8 = ssub.s32 1, %s6
  %s9 = scalar_select 0, %s8, %s6
  $region1: #{tpu_custom_call.1} parent=0
    #allocation2 [shape = 'u8[2048]{0}', space=vmem, size = 0x800, scoped, tag = 'input window, operand 0, single buffered']
    #allocation3 [shape = 's32[1]{0}', space=sflag, size = 0x4, scoped, tag = 'scoped memory for tpu_custom_call.1']
    #allocation4 [shape = 's32[1]{0}', space=sflag, size = 0x4, scoped, tag = 'scoped memory for tpu_custom_call.1']
    #allocation5 [shape = 'u8[262144]{0}', space=vmem, size = 0x40000, scoped, tag = 'input window, operand 1, single buffered']
    #allocation6 [shape = 's32[1]{0}', space=sflag, size = 0x4, scoped, tag = 'scoped memory for tpu_custom_call.1']
    #allocation7 [shape = 'u8[2048]{0}', space=vmem, size = 0x800, scoped, tag = 'input window, operand 2, single buffered']
    #allocation8 [shape = 'u8[262144]{0}', space=vmem, size = 0x40000, scoped, tag = 'input window, operand 3, single buffered']
    #allocation9 [shape = 's32[1]{0}', space=sflag, size = 0x4, scoped, tag = 'scoped memory for tpu_custom_call.1']
    #allocation10 [shape = 'u8[2048]{0}', space=vmem, size = 0x800, scoped, tag = 'output window, operand 0, single buffered']
    %10 = vsyncpa [#allocation3], 0
    %11 = vsyncpa [#allocation6], 0
    %12 = vsyncpa [#allocation9], 0
    %13 = vsyncpa [#allocation4], 0
    // Predicated region
    $region2: #{tpu_custom_call.1} parent=1 // pred_check
      _
    $region3: #{tpu_custom_call.1} parent=1 // pred_check_branch
      %15 = sbr.rel (0) target = $region5
    $region4: #{tpu_custom_call.1} parent=1 // pred_region
      %17 = vsyncadd [#allocation3], 0
      %s19 = sshll.u32 %s0, 4
      %s20 = int_to_ptr.hbm [resolvable:$true] %s19
      %s21 = sshll.u32 [#allocation2], 4
      %s22 = int_to_ptr.vmem [resolvable:$true] %s21
      %24 = dma.hbm_to_vmem [thread:$0]  %s20, 64, %s22, [#allocation3]
    $region5: #{tpu_custom_call.1} parent=1 // pred_fallthru
      _
    // Predicated region
    $region6: #{tpu_custom_call.1} parent=1 // pred_check
      _
    $region7: #{tpu_custom_call.1} parent=1 // pred_check_branch
      %26 = sbr.rel (0) target = $region9
    $region8: #{tpu_custom_call.1} parent=1 // pred_region
      %28 = vsyncadd [#allocation6], 0
      %s29 = sshll.u32 %s1, 4
      %s30 = int_to_ptr.hbm [resolvable:$true] %s29
      %s31 = sshll.u32 [#allocation5], 4
      %s32 = int_to_ptr.vmem [resolvable:$true] %s31
      %37 = dma.hbm_to_vmem [thread:$0]  %s30, 8192, %s32, [#allocation6], 512, 512, 32
    $region9: #{tpu_custom_call.1} parent=1 // pred_fallthru
      _
    // Predicated region
    $region10: #{tpu_custom_call.1} parent=1 // pred_check
      _
    $region11: #{tpu_custom_call.1} parent=1 // pred_check_branch
      %39 = sbr.rel (0) target = $region13
    $region12: #{tpu_custom_call.1} parent=1 // pred_region
      %41 = vsyncadd [#allocation6], 0
      %s43 = sshll.u32 %s2, 4
      %s44 = int_to_ptr.hbm [resolvable:$true] %s43
      %s45 = sshll.u32 [#allocation7], 4
      %s46 = int_to_ptr.vmem [resolvable:$true] %s45
      %48 = dma.hbm_to_vmem [thread:$0]  %s44, 64, %s46, [#allocation6]
    $region13: #{tpu_custom_call.1} parent=1 // pred_fallthru
      _
    // Predicated region
    $region14: #{tpu_custom_call.1} parent=1 // pred_check
      _
    $region15: #{tpu_custom_call.1} parent=1 // pred_check_branch
      %50 = sbr.rel (0) target = $region17
    $region16: #{tpu_custom_call.1} parent=1 // pred_region
      %52 = vsyncadd [#allocation9], 0
      %s53 = sshll.u32 %s3, 4
      %s54 = int_to_ptr.hbm [resolvable:$true] %s53
      %s55 = sshll.u32 [#allocation8], 4
      %s56 = int_to_ptr.vmem [resolvable:$true] %s55
      %61 = dma.hbm_to_vmem [thread:$0]  %s54, 8192, %s56, [#allocation9], 128, 128, 8
    $region17: #{tpu_custom_call.1} parent=1 // pred_fallthru
      _
    // Predicated region
    $region18: #{tpu_custom_call.1} parent=1 // pred_check
      _
    $region19: #{tpu_custom_call.1} parent=1 // pred_check_branch
      %63 = sbr.rel (0) target = $region21
    $region20: #{tpu_custom_call.1} parent=1 // pred_region
      _
    $region21: #{tpu_custom_call.1} parent=1 // pred_fallthru
      _
    // Predicated region
    $region22: #{tpu_custom_call.1} parent=1 // pred_check
      _
    $region23: #{tpu_custom_call.1} parent=1 // pred_check_branch
      %65 = sbr.rel (0) target = $region25
    $region24: #{tpu_custom_call.1} parent=1 // pred_region
      %67 = dma.done [#allocation3], 64
    $region25: #{tpu_custom_call.1} parent=1 // pred_fallthru
      _
    // Predicated region
    $region26: #{tpu_custom_call.1} parent=1 // pred_check
      _
    $region27: #{tpu_custom_call.1} parent=1 // pred_check_branch
      %69 = sbr.rel (0) target = $region29
    $region28: #{tpu_custom_call.1} parent=1 // pred_region
      %71 = dma.done [#allocation6], 8192
    $region29: #{tpu_custom_call.1} parent=1 // pred_fallthru
      _
    // Predicated region
    $region30: #{tpu_custom_call.1} parent=1 // pred_check
      _
    $region31: #{tpu_custom_call.1} parent=1 // pred_check_branch
      %73 = sbr.rel (0) target = $region33
    $region32: #{tpu_custom_call.1} parent=1 // pred_region
      %75 = dma.done [#allocation6], 64
    $region33: #{tpu_custom_call.1} parent=1 // pred_fallthru
      _
    // Predicated region
    $region34: #{tpu_custom_call.1} parent=1 // pred_check
      _
    $region35: #{tpu_custom_call.1} parent=1 // pred_check_branch
      %77 = sbr.rel (0) target = $region37
    $region36: #{tpu_custom_call.1} parent=1 // pred_region
      %79 = dma.done [#allocation9], 8192
    $region37: #{tpu_custom_call.1} parent=1 // pred_fallthru
      _
    %v80 = vld [vmem:[#allocation2] sm:$0xf]
    %v81 = vld [vmem:[#allocation5] sm:$0xff]
    %v82 = vld [vmem:[#allocation5 + $0x8] sm:$0xff]
    %v83 = vld [vmem:[#allocation5 + $0x10] sm:$0xff]
    %v84 = vld [vmem:[#allocation5 + $0x18] sm:$0xff]
    %v85 = vld [vmem:[#allocation5 + $0x20] sm:$0xff]
    %v86 = vld [vmem:[#allocation5 + $0x28] sm:$0xff]
    %v87 = vld [vmem:[#allocation5 + $0x30] sm:$0xff]
    %v88 = vld [vmem:[#allocation5 + $0x38] sm:$0xff]
    %v89 = vld [vmem:[#allocation5 + $0x40] sm:$0xff]
    %v90 = vld [vmem:[#allocation5 + $0x48] sm:$0xff]
    %v91 = vld [vmem:[#allocation5 + $0x50] sm:$0xff]
    %v92 = vld [vmem:[#allocation5 + $0x58] sm:$0xff]
    %v93 = vld [vmem:[#allocation5 + $0x60] sm:$0xff]
    %v94 = vld [vmem:[#allocation5 + $0x68] sm:$0xff]
    %v95 = vld [vmem:[#allocation5 + $0x70] sm:$0xff]
    %v96 = vld [vmem:[#allocation5 + $0x78] sm:$0xff]
    %v97 = vld [vmem:[#allocation5 + $0x80] sm:$0xff]
    %v98 = vld [vmem:[#allocation5 + $0x88] sm:$0xff]
    %v99 = vld [vmem:[#allocation5 + $0x90] sm:$0xff]
    %v100 = vld [vmem:[#allocation5 + $0x98] sm:$0xff]
    %v101 = vld [vmem:[#allocation5 + $0xa0] sm:$0xff]
    %v102 = vld [vmem:[#allocation5 + $0xa8] sm:$0xff]
    %v103 = vld [vmem:[#allocation5 + $0xb0] sm:$0xff]
    %v104 = vld [vmem:[#allocation5 + $0xb8] sm:$0xff]
    %v105 = vld [vmem:[#allocation5 + $0xc0] sm:$0xff]
    %v106 = vld [vmem:[#allocation5 + $0xc8] sm:$0xff]
    %v107 = vld [vmem:[#allocation5 + $0xd0] sm:$0xff]
    %v108 = vld [vmem:[#allocation5 + $0xd8] sm:$0xff]
    %v109 = vld [vmem:[#allocation5 + $0xe0] sm:$0xff]
    %v110 = vld [vmem:[#allocation5 + $0xe8] sm:$0xff]
    %v111 = vld [vmem:[#allocation5 + $0xf0] sm:$0xff]
    %v112 = vld [vmem:[#allocation5 + $0xf8] sm:$0xff]
    %v113 = vld [vmem:[#allocation5 + $0x100] sm:$0xff]
    %v114 = vld [vmem:[#allocation5 + $0x108] sm:$0xff]
    %v115 = vld [vmem:[#allocation5 + $0x110] sm:$0xff]
    %v116 = vld [vmem:[#allocation5 + $0x118] sm:$0xff]
    %v117 = vld [vmem:[#allocation5 + $0x120] sm:$0xff]
    %v118 = vld [vmem:[#allocation5 + $0x128] sm:$0xff]
    %v119 = vld [vmem:[#allocation5 + $0x130] sm:$0xff]
    %v120 = vld [vmem:[#allocation5 + $0x138] sm:$0xff]
    %v121 = vld [vmem:[#allocation5 + $0x140] sm:$0xff]
    %v122 = vld [vmem:[#allocation5 + $0x148] sm:$0xff]
    %v123 = vld [vmem:[#allocation5 + $0x150] sm:$0xff]
    %v124 = vld [vmem:[#allocation5 + $0x158] sm:$0xff]
    %v125 = vld [vmem:[#allocation5 + $0x160] sm:$0xff]
    %v126 = vld [vmem:[#allocation5 + $0x168] sm:$0xff]
    %v127 = vld [vmem:[#allocation5 + $0x170] sm:$0xff]
    %v128 = vld [vmem:[#allocation5 + $0x178] sm:$0xff]
    %v129 = vld [vmem:[#allocation5 + $0x180] sm:$0xff]
    %v130 = vld [vmem:[#allocation5 + $0x188] sm:$0xff]
    %v131 = vld [vmem:[#allocation5 + $0x190] sm:$0xff]
    %v132 = vld [vmem:[#allocation5 + $0x198] sm:$0xff]
    %v133 = vld [vmem:[#allocation5 + $0x1a0] sm:$0xff]
    %v134 = vld [vmem:[#allocation5 + $0x1a8] sm:$0xff]
    %v135 = vld [vmem:[#allocation5 + $0x1b0] sm:$0xff]
    %v136 = vld [vmem:[#allocation5 + $0x1b8] sm:$0xff]
    %v137 = vld [vmem:[#allocation5 + $0x1c0] sm:$0xff]
    %v138 = vld [vmem:[#allocation5 + $0x1c8] sm:$0xff]
    %v139 = vld [vmem:[#allocation5 + $0x1d0] sm:$0xff]
    %v140 = vld [vmem:[#allocation5 + $0x1d8] sm:$0xff]
    %v141 = vld [vmem:[#allocation5 + $0x1e0] sm:$0xff]
    %v142 = vld [vmem:[#allocation5 + $0x1e8] sm:$0xff]
    %v143 = vld [vmem:[#allocation5 + $0x1f0] sm:$0xff]
    %v144 = vld [vmem:[#allocation5 + $0x1f8] sm:$0xff]
    %v145 = vld [vmem:[#allocation7] sm:$0xf]
    %v147 = vperm.slane %v145, 0
    %v148 = vperm.slane %v145, 1
    %v149 = vperm.slane %v145, 2
    %v150 = vperm.slane %v145, 3
    %155 = vmatpush.msra.mxu0 %v141
    %156 = vmatpush.msra.mxu0 %v137
    %157 = vmatpush.msra.mxu0 %v133
    %158 = vmatpush.msra.mxu0 %v129
    %159 = vmatpush.msra.mxu0 %v125
    %160 = vmatpush.msra.mxu0 %v121
    %161 = vmatpush.msra.mxu0 %v117
    %162 = vmatpush.msra.mxu0 %v113
    %163 = vmatpush.msra.mxu0 %v109
    %164 = vmatpush.msra.mxu0 %v105
    %165 = vmatpush.msra.mxu0 %v101
    %166 = vmatpush.msra.mxu0 %v97
    %167 = vmatpush.msra.mxu0 %v93
    %168 = vmatpush.msra.mxu0 %v89
    %169 = vmatpush.msra.mxu0 %v85
    %170 = vmatpush.msra.mxu0 %v81
    %171 = vmatmul.f32.gmra.mxu0 %v80
    %v172 = vpop.f32.mrf.mxu0
    %v173 = vadd.f32 %v147, %v172
    %174 = vdwg.mxu0
    %175 = vmatpush.msra.mxu0 %v142
    %176 = vmatpush.msra.mxu0 %v138
    %177 = vmatpush.msra.mxu0 %v134
    %178 = vmatpush.msra.mxu0 %v130
    %179 = vmatpush.msra.mxu0 %v126
    %180 = vmatpush.msra.mxu0 %v122
    %181 = vmatpush.msra.mxu0 %v118
    %182 = vmatpush.msra.mxu0 %v114
    %183 = vmatpush.msra.mxu0 %v110
    %184 = vmatpush.msra.mxu0 %v106
    %185 = vmatpush.msra.mxu0 %v102
    %186 = vmatpush.msra.mxu0 %v98
    %187 = vmatpush.msra.mxu0 %v94
    %188 = vmatpush.msra.mxu0 %v90
    %189 = vmatpush.msra.mxu0 %v86
    %190 = vmatpush.msra.mxu0 %v82
    %191 = vmatmul.f32.gmra.mxu0 %v80
    %v192 = vpop.f32.mrf.mxu0
    %v193 = vadd.f32 %v148, %v192
    %194 = vdwg.mxu0
    %195 = vmatpush.msra.mxu0 %v143
    %196 = vmatpush.msra.mxu0 %v139
    %197 = vmatpush.msra.mxu0 %v135
    %198 = vmatpush.msra.mxu0 %v131
    %199 = vmatpush.msra.mxu0 %v127
    %200 = vmatpush.msra.mxu0 %v123
    %201 = vmatpush.msra.mxu0 %v119
    %202 = vmatpush.msra.mxu0 %v115
    %203 = vmatpush.msra.mxu0 %v111
    %204 = vmatpush.msra.mxu0 %v107
    %205 = vmatpush.msra.mxu0 %v103
    %206 = vmatpush.msra.mxu0 %v99
    %207 = vmatpush.msra.mxu0 %v95
    %208 = vmatpush.msra.mxu0 %v91
    %209 = vmatpush.msra.mxu0 %v87
    %210 = vmatpush.msra.mxu0 %v83
    %211 = vmatmul.f32.gmra.mxu0 %v80
    %v212 = vpop.f32.mrf.mxu0
    %v213 = vadd.f32 %v149, %v212
    %214 = vdwg.mxu0
    %215 = vmatpush.msra.mxu0 %v144
    %216 = vmatpush.msra.mxu0 %v140
    %217 = vmatpush.msra.mxu0 %v136
    %218 = vmatpush.msra.mxu0 %v132
    %219 = vmatpush.msra.mxu0 %v128
    %220 = vmatpush.msra.mxu0 %v124
    %221 = vmatpush.msra.mxu0 %v120
    %222 = vmatpush.msra.mxu0 %v116
    %223 = vmatpush.msra.mxu0 %v112
    %224 = vmatpush.msra.mxu0 %v108
    %225 = vmatpush.msra.mxu0 %v104
    %226 = vmatpush.msra.mxu0 %v100
    %227 = vmatpush.msra.mxu0 %v96
    %228 = vmatpush.msra.mxu0 %v92
    %229 = vmatpush.msra.mxu0 %v88
    %230 = vmatpush.msra.mxu0 %v84
    %231 = vmatmul.f32.gmra.mxu0 %v80
    %v232 = vpop.f32.mrf.mxu0
    %v233 = vadd.f32 %v150, %v232
    %234 = vdwg.mxu0
    %v235 = vxor.u32 %v173, 2147483648
    %v236 = vxor.u32 %v193, 2147483648
    %v237 = vxor.u32 %v213, 2147483648
    %v238 = vxor.u32 %v233, 2147483648
    %v239 = vmul.f32 %v235, 1.442695
    %v240 = vpow.pop %v239
    %v241 = vmul.f32 %v236, 1.442695
    %v242 = vpow.pop %v241
    %v243 = vmul.f32 %v237, 1.442695
    %v244 = vpow.pop %v243
    %v245 = vmul.f32 %v238, 1.442695
    %v246 = vpow.pop %v245
    %v247 = vadd.f32 %v240, 1.0
    %v248 = vadd.f32 %v242, 1.0
    %v249 = vadd.f32 %v244, 1.0
    %v250 = vadd.f32 %v246, 1.0
    %v251 = vrcp.pop %v247
    %v252 = vmul.f32 %v247, %v251
    %v253 = vsub.f32 1.0, %v252
    %v254 = vmul.f32 %v251, %v253
    %v255 = vadd.f32 %v251, %v254
    %vm256 = vweird.f32 %v247
    %vm257 = vweird.f32 %v251
    %vm258 = vmor %vm256, %vm257
    %v259 = vsel %vm258, %v251, %v255
    %v260 = vand.u32 2147483647, %v247
    %vm261 = vcmp.eq.f32.partialorder %v260, 8.507059e+37
    %v262 = vand.u32 %v247, 2147483648
    %v263 = vor.u32 1.1754944e-38, %v262
    %v264 = vsel %vm261, %v263, %v259
    %v265 = vmul.f32 1.0, %v264
    %v266 = vrcp.pop %v248
    %v267 = vmul.f32 %v248, %v266
    %v268 = vsub.f32 1.0, %v267
    %v269 = vmul.f32 %v266, %v268
    %v270 = vadd.f32 %v266, %v269
    %vm271 = vweird.f32 %v248
    %vm272 = vweird.f32 %v266
    %vm273 = vmor %vm271, %vm272
    %v274 = vsel %vm273, %v266, %v270
    %v275 = vand.u32 2147483647, %v248
    %vm276 = vcmp.eq.f32.partialorder %v275, 8.507059e+37
    %v277 = vand.u32 %v248, 2147483648
    %v278 = vor.u32 1.1754944e-38, %v277
    %v279 = vsel %vm276, %v278, %v274
    %v280 = vmul.f32 1.0, %v279
    %v281 = vrcp.pop %v249
    %v282 = vmul.f32 %v249, %v281
    %v283 = vsub.f32 1.0, %v282
    %v284 = vmul.f32 %v281, %v283
    %v285 = vadd.f32 %v281, %v284
    %vm286 = vweird.f32 %v249
    %vm287 = vweird.f32 %v281
    %vm288 = vmor %vm286, %vm287
    %v289 = vsel %vm288, %v281, %v285
    %v290 = vand.u32 2147483647, %v249
    %vm291 = vcmp.eq.f32.partialorder %v290, 8.507059e+37
    %v292 = vand.u32 %v249, 2147483648
    %v293 = vor.u32 1.1754944e-38, %v292
    %v294 = vsel %vm291, %v293, %v289
    %v295 = vmul.f32 1.0, %v294
    %v296 = vrcp.pop %v250
    %v297 = vmul.f32 %v250, %v296
    %v298 = vsub.f32 1.0, %v297
    %v299 = vmul.f32 %v296, %v298
    %v300 = vadd.f32 %v296, %v299
    %vm301 = vweird.f32 %v250
    %vm302 = vweird.f32 %v296
    %vm303 = vmor %vm301, %vm302
    %v304 = vsel %vm303, %v296, %v300
    %v305 = vand.u32 2147483647, %v250
    %vm306 = vcmp.eq.f32.partialorder %v305, 8.507059e+37
    %v307 = vand.u32 %v250, 2147483648
    %v308 = vor.u32 1.1754944e-38, %v307
    %v309 = vsel %vm306, %v308, %v304
    %v310 = vmul.f32 1.0, %v309
    %v311 = vmul.f32 %v173, %v265
    %v312 = vmul.f32 %v193, %v280
    %v313 = vmul.f32 %v213, %v295
    %v314 = vmul.f32 %v233, %v310
    %v315 = vld [vmem:[#allocation8] sm:$0xff]
    %v316 = vld [vmem:[#allocation8 + $0x8] sm:$0xff]
    %v317 = vld [vmem:[#allocation8 + $0x10] sm:$0xff]
    %v318 = vld [vmem:[#allocation8 + $0x18] sm:$0xff]
    %v319 = vld [vmem:[#allocation8 + $0x20] sm:$0xff]
    %v320 = vld [vmem:[#allocation8 + $0x28] sm:$0xff]
    %v321 = vld [vmem:[#allocation8 + $0x30] sm:$0xff]
    %v322 = vld [vmem:[#allocation8 + $0x38] sm:$0xff]
    %v323 = vld [vmem:[#allocation8 + $0x40] sm:$0xff]
    %v324 = vld [vmem:[#allocation8 + $0x48] sm:$0xff]
    %v325 = vld [vmem:[#allocation8 + $0x50] sm:$0xff]
    %v326 = vld [vmem:[#allocation8 + $0x58] sm:$0xff]
    %v327 = vld [vmem:[#allocation8 + $0x60] sm:$0xff]
    %v328 = vld [vmem:[#allocation8 + $0x68] sm:$0xff]
    %v329 = vld [vmem:[#allocation8 + $0x70] sm:$0xff]
    %v330 = vld [vmem:[#allocation8 + $0x78] sm:$0xff]
    %v331 = vld [vmem:[#allocation8 + $0x80] sm:$0xff]
    %v332 = vld [vmem:[#allocation8 + $0x88] sm:$0xff]
    %v333 = vld [vmem:[#allocation8 + $0x90] sm:$0xff]
    %v334 = vld [vmem:[#allocation8 + $0x98] sm:$0xff]
    %v335 = vld [vmem:[#allocation8 + $0xa0] sm:$0xff]
    %v336 = vld [vmem:[#allocation8 + $0xa8] sm:$0xff]
    %v337 = vld [vmem:[#allocation8 + $0xb0] sm:$0xff]
    %v338 = vld [vmem:[#allocation8 + $0xb8] sm:$0xff]
    %v339 = vld [vmem:[#allocation8 + $0xc0] sm:$0xff]
    %v340 = vld [vmem:[#allocation8 + $0xc8] sm:$0xff]
    %v341 = vld [vmem:[#allocation8 + $0xd0] sm:$0xff]
    %v342 = vld [vmem:[#allocation8 + $0xd8] sm:$0xff]
    %v343 = vld [vmem:[#allocation8 + $0xe0] sm:$0xff]
    %v344 = vld [vmem:[#allocation8 + $0xe8] sm:$0xff]
    %v345 = vld [vmem:[#allocation8 + $0xf0] sm:$0xff]
    %v346 = vld [vmem:[#allocation8 + $0xf8] sm:$0xff]
    %v347 = vld [vmem:[#allocation8 + $0x100] sm:$0xff]
    %v348 = vld [vmem:[#allocation8 + $0x108] sm:$0xff]
    %v349 = vld [vmem:[#allocation8 + $0x110] sm:$0xff]
    %v350 = vld [vmem:[#allocation8 + $0x118] sm:$0xff]
    %v351 = vld [vmem:[#allocation8 + $0x120] sm:$0xff]
    %v352 = vld [vmem:[#allocation8 + $0x128] sm:$0xff]
    %v353 = vld [vmem:[#allocation8 + $0x130] sm:$0xff]
    %v354 = vld [vmem:[#allocation8 + $0x138] sm:$0xff]
    %v355 = vld [vmem:[#allocation8 + $0x140] sm:$0xff]
    %v356 = vld [vmem:[#allocation8 + $0x148] sm:$0xff]
    %v357 = vld [vmem:[#allocation8 + $0x150] sm:$0xff]
    %v358 = vld [vmem:[#allocation8 + $0x158] sm:$0xff]
    %v359 = vld [vmem:[#allocation8 + $0x160] sm:$0xff]
    %v360 = vld [vmem:[#allocation8 + $0x168] sm:$0xff]
    %v361 = vld [vmem:[#allocation8 + $0x170] sm:$0xff]
    %v362 = vld [vmem:[#allocation8 + $0x178] sm:$0xff]
    %v363 = vld [vmem:[#allocation8 + $0x180] sm:$0xff]
    %v364 = vld [vmem:[#allocation8 + $0x188] sm:$0xff]
    %v365 = vld [vmem:[#allocation8 + $0x190] sm:$0xff]
    %v366 = vld [vmem:[#allocation8 + $0x198] sm:$0xff]
    %v367 = vld [vmem:[#allocation8 + $0x1a0] sm:$0xff]
    %v368 = vld [vmem:[#allocation8 + $0x1a8] sm:$0xff]
    %v369 = vld [vmem:[#allocation8 + $0x1b0] sm:$0xff]
    %v370 = vld [vmem:[#allocation8 + $0x1b8] sm:$0xff]
    %v371 = vld [vmem:[#allocation8 + $0x1c0] sm:$0xff]
    %v372 = vld [vmem:[#allocation8 + $0x1c8] sm:$0xff]
    %v373 = vld [vmem:[#allocation8 + $0x1d0] sm:$0xff]
    %v374 = vld [vmem:[#allocation8 + $0x1d8] sm:$0xff]
    %v375 = vld [vmem:[#allocation8 + $0x1e0] sm:$0xff]
    %v376 = vld [vmem:[#allocation8 + $0x1e8] sm:$0xff]
    %v377 = vld [vmem:[#allocation8 + $0x1f0] sm:$0xff]
    %v378 = vld [vmem:[#allocation8 + $0x1f8] sm:$0xff]
    %v379 = vld [vmem:[%s4] sm:$0x1]
    %v381 = vperm.slane %v379, 0
    %383 = vmatpush.msra.mxu0 %v330
    %384 = vmatpush.msra.mxu0 %v329
    %385 = vmatpush.msra.mxu0 %v328
    %386 = vmatpush.msra.mxu0 %v327
    %387 = vmatpush.msra.mxu0 %v326
    %388 = vmatpush.msra.mxu0 %v325
    %389 = vmatpush.msra.mxu0 %v324
    %390 = vmatpush.msra.mxu0 %v323
    %391 = vmatpush.msra.mxu0 %v322
    %392 = vmatpush.msra.mxu0 %v321
    %393 = vmatpush.msra.mxu0 %v320
    %394 = vmatpush.msra.mxu0 %v319
    %395 = vmatpush.msra.mxu0 %v318
    %396 = vmatpush.msra.mxu0 %v317
    %397 = vmatpush.msra.mxu0 %v316
    %398 = vmatpush.msra.mxu0 %v315
    %399 = vmatmul.f32.gmra.mxu0 %v311
    %v400 = vpop.f32.mrf.mxu0
    %v401 = vadd.f32 %v381, %v400
    %402 = vdwg.mxu0
    %403 = vmatpush.msra.mxu0 %v346
    %404 = vmatpush.msra.mxu0 %v345
    %405 = vmatpush.msra.mxu0 %v344
    %406 = vmatpush.msra.mxu0 %v343
    %407 = vmatpush.msra.mxu0 %v342
    %408 = vmatpush.msra.mxu0 %v341
    %409 = vmatpush.msra.mxu0 %v340
    %410 = vmatpush.msra.mxu0 %v339
    %411 = vmatpush.msra.mxu0 %v338
    %412 = vmatpush.msra.mxu0 %v337
    %413 = vmatpush.msra.mxu0 %v336
    %414 = vmatpush.msra.mxu0 %v335
    %415 = vmatpush.msra.mxu0 %v334
    %416 = vmatpush.msra.mxu0 %v333
    %417 = vmatpush.msra.mxu0 %v332
    %418 = vmatpush.msra.mxu0 %v331
    %419 = vmatmul.f32.gmra.mxu0 %v312
    %v420 = vpop.f32.mrf.mxu0
    %v421 = vadd.f32 %v401, %v420
    %422 = vdwg.mxu0
    %423 = vmatpush.msra.mxu0 %v362
    %424 = vmatpush.msra.mxu0 %v361
    %425 = vmatpush.msra.mxu0 %v360
    %426 = vmatpush.msra.mxu0 %v359
    %427 = vmatpush.msra.mxu0 %v358
    %428 = vmatpush.msra.mxu0 %v357
    %429 = vmatpush.msra.mxu0 %v356
    %430 = vmatpush.msra.mxu0 %v355
    %431 = vmatpush.msra.mxu0 %v354
    %432 = vmatpush.msra.mxu0 %v353
    %433 = vmatpush.msra.mxu0 %v352
    %434 = vmatpush.msra.mxu0 %v351
    %435 = vmatpush.msra.mxu0 %v350
    %436 = vmatpush.msra.mxu0 %v349
    %437 = vmatpush.msra.mxu0 %v348
    %438 = vmatpush.msra.mxu0 %v347
    %439 = vmatmul.f32.gmra.mxu0 %v313
    %v440 = vpop.f32.mrf.mxu0
    %v441 = vadd.f32 %v421, %v440
    %442 = vdwg.mxu0
    %443 = vmatpush.msra.mxu0 %v378
    %444 = vmatpush.msra.mxu0 %v377
    %445 = vmatpush.msra.mxu0 %v376
    %446 = vmatpush.msra.mxu0 %v375
    %447 = vmatpush.msra.mxu0 %v374
    %448 = vmatpush.msra.mxu0 %v373
    %449 = vmatpush.msra.mxu0 %v372
    %450 = vmatpush.msra.mxu0 %v371
    %451 = vmatpush.msra.mxu0 %v370
    %452 = vmatpush.msra.mxu0 %v369
    %453 = vmatpush.msra.mxu0 %v368
    %454 = vmatpush.msra.mxu0 %v367
    %455 = vmatpush.msra.mxu0 %v366
    %456 = vmatpush.msra.mxu0 %v365
    %457 = vmatpush.msra.mxu0 %v364
    %458 = vmatpush.msra.mxu0 %v363
    %459 = vmatmul.f32.gmra.mxu0 %v314
    %v460 = vpop.f32.mrf.mxu0
    %v461 = vadd.f32 %v441, %v460
    %462 = vdwg.mxu0
    %463 = vst [vmem:[#allocation10] sm:$0xf] %v461
    // Predicated region
    $region38: #{tpu_custom_call.1} parent=1 // pred_check
      _
    $region39: #{tpu_custom_call.1} parent=1 // pred_check_branch
      %465 = sbr.rel (0) target = $region41
    $region40: #{tpu_custom_call.1} parent=1 // pred_region
      %467 = vsyncadd [#allocation4], 0
      %s469 = sshll.u32 [#allocation10], 4
      %s470 = int_to_ptr.vmem [resolvable:$true] %s469
      %s471 = sshll.u32 %s5, 4
      %s472 = int_to_ptr.hbm [resolvable:$true] %s471
      %474 = dma.vmem_to_hbm [thread:$0]  %s470, 64, %s472, [#allocation4]
    $region41: #{tpu_custom_call.1} parent=1 // pred_fallthru
      _
    // Predicated region
    $region42: #{tpu_custom_call.1} parent=1 // pred_check
      _
    $region43: #{tpu_custom_call.1} parent=1 // pred_check_branch
      %476 = sbr.rel (0) target = $region45
    $region44: #{tpu_custom_call.1} parent=1 // pred_region
      %478 = dma.done [#allocation4], 64
    $region45: #{tpu_custom_call.1} parent=1 // pred_fallthru
      _
    %479 = vsyncpa [#allocation3], 1
    %480 = vsyncpa [#allocation6], 1
    %481 = vsyncpa [#allocation9], 1
    %482 = vsyncpa [#allocation4], 1

</llo_original>
